<compile_context>
chip_gen: v7x
topology: tpu7x:2x2x1
jax: 0.10.0
libtpu: 0.0.40
codegen_flags: <defaults>
</compile_context>

<pallas_src>
import functools

import jax
import jax.numpy as jnp
import numpy as np
from jax.experimental import pallas as pl
from jax.experimental.pallas import tpu as pltpu


def _round_up(x, m):
    return ((x + m - 1) // m) * m


# ----------------------------------------------------------------------------
# Pallas kernel: time-chunked single-layer LSTM + dense head.
# ----------------------------------------------------------------------------
def _lstm_dense_kernel(len_ref,    # (Bt, 1)   int32 sequence lengths (per batch tile)
                       x_ref,      # (1, 1, T*Bt, E) bf16 embedded tokens for this chunk
                       wih_ref,    # (E, 4H)   bf16  W_ih^T (gate order i, f, g, o)
                       whh_ref,    # (H, 4H)   bf16  W_hh^T
                       b_ref,      # (1, 4H)   f32   b_ih + b_hh
                       wd_ref,     # (H, Pp)   bf16  dense weight^T (lane-padded)
                       bd_ref,     # (1, Pp)   f32   dense bias     (lane-padded)
                       out_ref,    # (Bt, Pp)  f32   logits
                       h_scr,      # (Bt, H)   f32   VMEM carry across chunks
                       c_scr,      # (Bt, H)   f32   VMEM carry across chunks
                       *, t_chunk, hidden):
    T = t_chunk
    H = hidden
    B = h_scr.shape[0]

    ti = pl.program_id(1)           # time-chunk index ("arbitrary" axis)

    @pl.when(ti == 0)
    def _():
        h_scr[...] = jnp.zeros_like(h_scr)
        c_scr[...] = jnp.zeros_like(c_scr)

    # ---- Hoisted input projection: one big MXU matmul per chunk (+ bias). ----
    x_flat = x_ref[0, 0]                                       # (T*B, E) bf16
    gx = jnp.dot(x_flat, wih_ref[...],
                 preferred_element_type=jnp.float32) + b_ref[...]   # (T*B, 4H) f32

    whh = whh_ref[...]                                         # (H, 4H) bf16
    lens = len_ref[...]                                        # (B, 1)  int32
    t_base = ti * T

    h = h_scr[...]
    c = c_scr[...]

    # Statically unrolled serial recurrence over the chunk.
    for t in range(T):
        gates = gx[t * B:(t + 1) * B, :] + jnp.dot(
            h.astype(jnp.bfloat16), whh, preferred_element_type=jnp.float32)
        sig = jax.nn.sigmoid(gates)        # full-width EUP pass
        tnh = jnp.tanh(gates)              # full-width EUP pass
        i_g = sig[:, 0 * H:1 * H]
        f_g = sig[:, 1 * H:2 * H]
        g_g = tnh[:, 2 * H:3 * H]
        o_g = sig[:, 3 * H:4 * H]
        c_new = f_g * c + i_g * g_g
        h_new = o_g * jnp.tanh(c_new)
        keep = (t_base + t) < lens         # (B, 1): freeze past sequence end
        h = jnp.where(keep, h_new, h)
        c = jnp.where(keep, c_new, c)

    h_scr[...] = h
    c_scr[...] = c

    @pl.when(ti == pl.num_programs(1) - 1)
    def _():
        out_ref[...] = (jnp.dot(h.astype(jnp.bfloat16), wd_ref[...],
                                preferred_element_type=jnp.float32)
                        + bd_ref[...])


def _run_lstm_dense(embedding, token_ids, lens, wih_t, whh_t, b_gates, wd_t, bd,
                    *, t_chunk=8, b_tile=None):
    B, L = token_ids.shape
    E = embedding.shape[1]
    H = whh_t.shape[0]
    P = wd_t.shape[1]

    B_pad = _round_up(max(B, 8), 8)
    if b_tile is None:
        b_tile = B_pad
    b_tile = _round_up(min(b_tile, B_pad), 8)
    B_pad = _round_up(B_pad, b_tile)
    L_pad = _round_up(L, t_chunk)
    P_pad = _round_up(P, 128)
    n_btiles = B_pad // b_tile
    n_chunks = L_pad // t_chunk

    # Arrange gather indices so the embedded rows land directly in the kernel's
    # (chunk, batch-tile, t*b_tile) layout: permuting the tiny int32 index
    # array avoids any HBM transpose of the wide embedded activations.
    ids = jnp.zeros((B_pad, L_pad), token_ids.dtype).at[:B, :L].set(token_ids)
    ids = ids.T                                                  # (L_pad, B_pad)
    ids = ids.reshape(n_chunks, t_chunk, n_btiles, b_tile)
    ids = ids.transpose(0, 2, 1, 3).reshape(n_chunks, n_btiles, t_chunk * b_tile)
    x_arranged = embedding.astype(jnp.bfloat16)[ids]             # (C, Bt, T*b, E)

    lens_p = jnp.zeros((B_pad, 1), jnp.int32).at[:B, 0].set(lens.astype(jnp.int32))
    wd_p = jnp.zeros((H, P_pad), jnp.bfloat16).at[:, :P].set(wd_t.astype(jnp.bfloat16))
    bd_p = jnp.zeros((1, P_pad), jnp.float32).at[:, :P].set(bd.astype(jnp.float32))

    kernel = functools.partial(_lstm_dense_kernel, t_chunk=t_chunk, hidden=H)

    out = pl.pallas_call(
        kernel,
        out_shape=jax.ShapeDtypeStruct((B_pad, P_pad), jnp.float32),
        grid_spec=pltpu.PrefetchScalarGridSpec(
            num_scalar_prefetch=0,
            grid=(n_btiles, n_chunks),
            in_specs=[
                pl.BlockSpec((b_tile, 1), lambda bi, ti: (bi, 0)),
                pl.BlockSpec((1, 1, t_chunk * b_tile, E),
                             lambda bi, ti: (ti, bi, 0, 0)),
                pl.BlockSpec((E, 4 * H), lambda bi, ti: (0, 0)),
                pl.BlockSpec((H, 4 * H), lambda bi, ti: (0, 0)),
                pl.BlockSpec((1, 4 * H), lambda bi, ti: (0, 0)),
                pl.BlockSpec((H, P_pad), lambda bi, ti: (0, 0)),
                pl.BlockSpec((1, P_pad), lambda bi, ti: (0, 0)),
            ],
            out_specs=pl.BlockSpec((b_tile, P_pad), lambda bi, ti: (bi, 0)),
            scratch_shapes=[
                pltpu.VMEM((b_tile, H), jnp.float32),
                pltpu.VMEM((b_tile, H), jnp.float32),
            ],
        ),
        compiler_params=pltpu.CompilerParams(
            dimension_semantics=("parallel", "arbitrary"),
            vmem_limit_bytes=32 * 1024 * 1024,
        ),
    )(lens_p,
      x_arranged,
      wih_t.astype(jnp.bfloat16),
      whh_t.astype(jnp.bfloat16),
      b_gates.astype(jnp.float32),
      wd_p,
      bd_p)

    return out[:B, :P]


# ----------------------------------------------------------------------------
# Module wrapper (mirrors SHAP_LSTM.forward).
# ----------------------------------------------------------------------------
def shap_lstm_forward(params, inputs, label, weights, update=True,
                      *, t_chunk=8, b_tile=None):
    text_raw_indices, aspect_indices = inputs[0], inputs[1]

    x_len = jnp.sum(text_raw_indices != 0, axis=-1).astype(jnp.int32)   # (B,)

    # Aspect position mask (mirrors aspect_idx in the reference forward).
    aspect_idx = (text_raw_indices ==
                  aspect_indices[:, 0].reshape((-1, 1))).astype(jnp.float32)
    del aspect_idx  # consumed only by external SHAP modules (see TODOs below).

    out = _run_lstm_dense(
        params["embedding"], text_raw_indices, x_len,
        params["w_ih_t"], params["w_hh_t"], params["b_gates"],
        params["w_dense_t"], params["b_dense"],
        t_chunk=t_chunk, b_tile=b_tile)

    if update:
        # TODO(synk): Distribution_SHAP weight update (self.shap) is an external
        # module with no definition provided; weights are passed through unchanged.
        return out, weights
    else:
        # TODO(synk): Map_SHAP re-weighting of embeddings (self.map_shap) is an
        # external module with no definition provided; plain LSTM path is used.
        return out


# ----------------------------------------------------------------------------
# Pure-JAX reference (same precision policy as the kernel: bf16 matmuls,
# f32 accumulate / gate math) for a correctness check.
# ----------------------------------------------------------------------------
def _reference_lstm_dense(embedding, token_ids, x_len, params):
    x = embedding.astype(jnp.bfloat16)[token_ids]                  # (B, L, E)
    B, L, _ = x.shape
    H = params["w_hh_t"].shape[0]
    wih = params["w_ih_t"].astype(jnp.bfloat16)
    whh = params["w_hh_t"].astype(jnp.bfloat16)
    wd = params["w_dense_t"].astype(jnp.bfloat16)
    b = params["b_gates"].astype(jnp.float32)
    h = jnp.zeros((B, H), jnp.float32)
    c = jnp.zeros((B, H), jnp.float32)
    for t in range(L):
        gates = (jnp.dot(x[:, t, :], wih, preferred_element_type=jnp.float32)
                 + jnp.dot(h.astype(jnp.bfloat16), whh,
                           preferred_element_type=jnp.float32) + b)
        i_g = jax.nn.sigmoid(gates[:, 0:H])
        f_g = jax.nn.sigmoid(gates[:, H:2 * H])
        g_g = jnp.tanh(gates[:, 2 * H:3 * H])
        o_g = jax.nn.sigmoid(gates[:, 3 * H:4 * H])
        c_new = f_g * c + i_g * g_g
        h_new = o_g * jnp.tanh(c_new)
        m = (t < x_len)[:, None]
        h = jnp.where(m, h_new, h)
        c = jnp.where(m, c_new, c)
    return (jnp.dot(h.astype(jnp.bfloat16), wd,
                    preferred_element_type=jnp.float32) + params["b_dense"])


# ----------------------------------------------------------------------------
# Deterministic parameter construction.
# ----------------------------------------------------------------------------
def make_params(vocab_size, embed_dim, hidden_dim, polarities_dim):
    key = jax.random.PRNGKey(0)
    k_emb, k_wih, k_whh, k_bih, k_bhh, k_wd, k_bd = jax.random.split(key, 7)
    s = 1.0 / np.sqrt(hidden_dim)
    params = {
        "embedding": jax.random.normal(k_emb, (vocab_size, embed_dim),
                                       jnp.float32) * 0.1,
        # PyTorch LSTM stores W_ih: (4H, E); we keep the transpose. Gate order i,f,g,o.
        "w_ih_t": jax.random.uniform(k_wih, (embed_dim, 4 * hidden_dim),
                                     jnp.float32, -s, s),
        "w_hh_t": jax.random.uniform(k_whh, (hidden_dim, 4 * hidden_dim),
                                     jnp.float32, -s, s),
        "b_gates": (jax.random.uniform(k_bih, (1, 4 * hidden_dim),
                                       jnp.float32, -s, s)
                    + jax.random.uniform(k_bhh, (1, 4 * hidden_dim),
                                         jnp.float32, -s, s)),
        "w_dense_t": jax.random.uniform(k_wd, (hidden_dim, polarities_dim),
                                        jnp.float32, -s, s),
        "b_dense": jax.random.uniform(k_bd, (1, polarities_dim),
                                      jnp.float32, -s, s),
    }
    # Zero-pad token 0 in the embedding (padding index convention).
    params["embedding"] = params["embedding"].at[0].set(0.0)
    return params


if __name__ == "__main__":
    # Small shapes consistent with the module.
    B, L = 2, 8            # batch, max_seq_len
    E, H, P = 32, 32, 3    # embed_dim, hidden_dim, polarities_dim
    VOCAB = 20

    params = make_params(VOCAB, E, H, P)

    # Deterministic synthetic inputs: padded token indices (0 == pad).
    key = jax.random.PRNGKey(0)
    k_txt, _ = jax.random.split(key)
    text_raw_indices = jax.random.randint(k_txt, (B, L), 1, VOCAB, jnp.int32)
    lengths = jnp.array([6, 8], dtype=jnp.int32)
    pad_mask = jnp.arange(L)[None, :] < lengths[:, None]
    text_raw_indices = jnp.where(pad_mask, text_raw_indices, 0)

    # Aspect indices: first aspect token chosen from each sentence, rest padded.
    aspect_indices = jnp.zeros((B, L), jnp.int32).at[:, 0].set(
        text_raw_indices[:, 2])
    label = jnp.array([0, 2], dtype=jnp.int32)
    weights = jnp.zeros((B, L), jnp.float32)   # placeholder SHAP weights

    out, new_weights = shap_lstm_forward(
        params, (text_raw_indices, aspect_indices), label, weights, update=True)
    out = jax.block_until_ready(out)

    # Sanity check against a pure-JAX reference of the LSTM + dense path.
    x_len = jnp.sum(text_raw_indices != 0, axis=-1).astype(jnp.int32)
    ref = _reference_lstm_dense(params["embedding"], text_raw_indices, x_len,
                                params)
    np.testing.assert_allclose(np.asarray(out), np.asarray(ref),
                               rtol=1e-2, atol=1e-2)

    print("KERNEL_OK")
</pallas_src>

<mosaic_0001>
module attributes {stable_mosaic.version = 11 : i64} {
  func.func @_lstm_dense_kernel(%arg0: i32, %arg1: i32, %arg2: memref<8x1xi32, #tpu.memory_space<vmem>>, %arg3: memref<1x1x64x32xbf16, #tpu.memory_space<vmem>>, %arg4: memref<32x128xbf16, #tpu.memory_space<vmem>>, %arg5: memref<32x128xbf16, #tpu.memory_space<vmem>>, %arg6: memref<1x128xf32, #tpu.memory_space<vmem>>, %arg7: memref<32x128xbf16, #tpu.memory_space<vmem>>, %arg8: memref<1x128xf32, #tpu.memory_space<vmem>>, %arg9: memref<8x128xf32, #tpu.memory_space<vmem>>, %arg10: memref<8x32xf32, #tpu.memory_space<vmem>>, %arg11: memref<8x32xf32, #tpu.memory_space<vmem>>) attributes {dimension_semantics = [#tpu.dimension_semantics<parallel>, #tpu.dimension_semantics<arbitrary>], iteration_bounds = array<i64: 1, 1>, scalar_prefetch = 0 : i64, scratch_operands = 2 : i64, tpu.core_type = #tpu.core_type<tc>, window_params = [{transform_indices = @transform_0, window_bounds = array<i64: 8, 1>}, {transform_indices = @transform_1, window_bounds = array<i64: 1, 1, 64, 32>}, {pipeline_mode = #tpu.pipeline_mode<synchronous>, transform_indices = @transform_2, window_bounds = array<i64: 32, 128>}, {pipeline_mode = #tpu.pipeline_mode<synchronous>, transform_indices = @transform_3, window_bounds = array<i64: 32, 128>}, {pipeline_mode = #tpu.pipeline_mode<synchronous>, transform_indices = @transform_4, window_bounds = array<i64: 1, 128>}, {pipeline_mode = #tpu.pipeline_mode<synchronous>, transform_indices = @transform_5, window_bounds = array<i64: 32, 128>}, {pipeline_mode = #tpu.pipeline_mode<synchronous>, transform_indices = @transform_6, window_bounds = array<i64: 1, 128>}, {transform_indices = @transform_7, window_bounds = array<i64: 8, 128>}]} {
    %c0_i32 = arith.constant 0 : i32
    %0 = arith.cmpi eq, %arg1, %c0_i32 : i32
    %1 = arith.extui %0 : i1 to i32
    %c0_i32_0 = arith.constant 0 : i32
    %2 = arith.cmpi ne, %1, %c0_i32_0 : i32
    scf.if %2 {
      %cst_39 = arith.constant 0.000000e+00 : f32
      %244 = vector.broadcast %cst_39 : f32 to vector<8x32xf32>
      %c0_40 = arith.constant 0 : index
      %c0_41 = arith.constant 0 : index
      %245 = vector.load %arg10[%c0_40, %c0_41] : memref<8x32xf32, #tpu.memory_space<vmem>>, vector<8x32xf32>
      tpu.vector_store %arg10[%c0_40, %c0_41], %244 {strides = array<i32>} : memref<8x32xf32, #tpu.memory_space<vmem>>, vector<8x32xf32>,
      %cst_42 = arith.constant 0.000000e+00 : f32
      %246 = vector.broadcast %cst_42 : f32 to vector<8x32xf32>
      %c0_43 = arith.constant 0 : index
      %c0_44 = arith.constant 0 : index
      %247 = vector.load %arg11[%c0_43, %c0_44] : memref<8x32xf32, #tpu.memory_space<vmem>>, vector<8x32xf32>
      tpu.vector_store %arg11[%c0_43, %c0_44], %246 {strides = array<i32>} : memref<8x32xf32, #tpu.memory_space<vmem>>, vector<8x32xf32>,
    } else {
    }
    %c0 = arith.constant 0 : index
    %c0_1 = arith.constant 0 : index
    %c0_2 = arith.constant 0 : index
    %c0_3 = arith.constant 0 : index
    %3 = vector.load %arg3[%c0, %c0_1, %c0_2, %c0_3] : memref<1x1x64x32xbf16, #tpu.memory_space<vmem>>, vector<1x1x64x32xbf16>
    %4 = vector.shape_cast %3 : vector<1x1x64x32xbf16> to vector<64x32xbf16>
    %c0_4 = arith.constant 0 : index
    %c0_5 = arith.constant 0 : index
    %5 = vector.load %arg4[%c0_4, %c0_5] : memref<32x128xbf16, #tpu.memory_space<vmem>>, vector<32x128xbf16>
    %cst = arith.constant dense<0.000000e+00> : vector<64x128xf32>
    %6 = tpu.matmul %4, %5, %cst {dimension_numbers = #tpu.dot_dimension_numbers<[1], [0], [0], [1], [0, 0, 1, 1], [], []>} : vector<64x32xbf16>, vector<32x128xbf16>, vector<64x128xf32> -> vector<64x128xf32>
    %c0_6 = arith.constant 0 : index
    %c0_7 = arith.constant 0 : index
    %7 = vector.load %arg6[%c0_6, %c0_7] : memref<1x128xf32, #tpu.memory_space<vmem>>, vector<1x128xf32>
    %8 = vector.broadcast %7 : vector<1x128xf32> to vector<64x128xf32>
    %9 = arith.addf %6, %8 : vector<64x128xf32>
    %c0_8 = arith.constant 0 : index
    %c0_9 = arith.constant 0 : index
    %10 = vector.load %arg5[%c0_8, %c0_9] : memref<32x128xbf16, #tpu.memory_space<vmem>>, vector<32x128xbf16>
    %c0_10 = arith.constant 0 : index
    %c0_11 = arith.constant 0 : index
    %11 = vector.load %arg2[%c0_10, %c0_11] : memref<8x1xi32, #tpu.memory_space<vmem>>, vector<8x1xi32>
    %c8_i32 = arith.constant 8 : i32
    %12 = arith.muli %arg1, %c8_i32 : i32
    %c0_12 = arith.constant 0 : index
    %c0_13 = arith.constant 0 : index
    %13 = vector.load %arg10[%c0_12, %c0_13] : memref<8x32xf32, #tpu.memory_space<vmem>>, vector<8x32xf32>
    %c0_14 = arith.constant 0 : index
    %c0_15 = arith.constant 0 : index
    %14 = vector.load %arg11[%c0_14, %c0_15] : memref<8x32xf32, #tpu.memory_space<vmem>>, vector<8x32xf32>
    %15 = vector.extract_strided_slice %9 {offsets = [0, 0], sizes = [8, 128], strides = [1, 1]} : vector<64x128xf32> to vector<8x128xf32>
    %16 = arith.truncf %13 : vector<8x32xf32> to vector<8x32xbf16>
    %cst_16 = arith.constant dense<0.000000e+00> : vector<8x128xf32>
    %17 = tpu.matmul %16, %10, %cst_16 {dimension_numbers = #tpu.dot_dimension_numbers<[1], [0], [0], [1], [0, 0, 1, 1], [], []>} : vector<8x32xbf16>, vector<32x128xbf16>, vector<8x128xf32> -> vector<8x128xf32>
    %18 = arith.addf %15, %17 : vector<8x128xf32>
    %19 = arith.negf %18 : vector<8x128xf32>
    %20 = math.exp %19 : vector<8x128xf32>
    %cst_17 = arith.constant 1.000000e+00 : f32
    %21 = vector.broadcast %cst_17 : f32 to vector<8x128xf32>
    %22 = arith.addf %21, %20 : vector<8x128xf32>
    %23 = arith.divf %21, %22 : vector<8x128xf32>
    %24 = math.tanh %18 : vector<8x128xf32>
    %25 = vector.extract_strided_slice %23 {offsets = [0, 0], sizes = [8, 32], strides = [1, 1]} : vector<8x128xf32> to vector<8x32xf32>
    %26 = vector.extract_strided_slice %23 {offsets = [0, 32], sizes = [8, 32], strides = [1, 1]} : vector<8x128xf32> to vector<8x32xf32>
    %27 = vector.extract_strided_slice %24 {offsets = [0, 64], sizes = [8, 32], strides = [1, 1]} : vector<8x128xf32> to vector<8x32xf32>
    %28 = vector.extract_strided_slice %23 {offsets = [0, 96], sizes = [8, 32], strides = [1, 1]} : vector<8x128xf32> to vector<8x32xf32>
    %29 = arith.mulf %26, %14 : vector<8x32xf32>
    %30 = arith.mulf %25, %27 : vector<8x32xf32>
    %31 = arith.addf %29, %30 : vector<8x32xf32>
    %32 = math.tanh %31 : vector<8x32xf32>
    %33 = arith.mulf %28, %32 : vector<8x32xf32>
    %c0_i32_18 = arith.constant 0 : i32
    %34 = arith.addi %12, %c0_i32_18 : i32
    %35 = vector.broadcast %34 : i32 to vector<8x1xi32>
    %36 = arith.cmpi slt, %35, %11 : vector<8x1xi32>
    %37 = vector.shape_cast %36 : vector<8x1xi1> to vector<8x1xi1>
    %38 = vector.broadcast %37 : vector<8x1xi1> to vector<8x32xi1>
    %39 = arith.select %38, %33, %13 : vector<8x32xi1>, vector<8x32xf32>
    %40 = vector.shape_cast %36 : vector<8x1xi1> to vector<8x1xi1>
    %41 = vector.broadcast %40 : vector<8x1xi1> to vector<8x32xi1>
    %42 = arith.select %41, %31, %14 : vector<8x32xi1>, vector<8x32xf32>
    %43 = vector.extract_strided_slice %9 {offsets = [8, 0], sizes = [8, 128], strides = [1, 1]} : vector<64x128xf32> to vector<8x128xf32>
    %44 = arith.truncf %39 : vector<8x32xf32> to vector<8x32xbf16>
    %cst_19 = arith.constant dense<0.000000e+00> : vector<8x128xf32>
    %45 = tpu.matmul %44, %10, %cst_19 {dimension_numbers = #tpu.dot_dimension_numbers<[1], [0], [0], [1], [0, 0, 1, 1], [], []>} : vector<8x32xbf16>, vector<32x128xbf16>, vector<8x128xf32> -> vector<8x128xf32>
    %46 = arith.addf %43, %45 : vector<8x128xf32>
    %47 = arith.negf %46 : vector<8x128xf32>
    %48 = math.exp %47 : vector<8x128xf32>
    %cst_20 = arith.constant 1.000000e+00 : f32
    %49 = vector.broadcast %cst_20 : f32 to vector<8x128xf32>
    %50 = arith.addf %49, %48 : vector<8x128xf32>
    %51 = arith.divf %49, %50 : vector<8x128xf32>
    %52 = math.tanh %46 : vector<8x128xf32>
    %53 = vector.extract_strided_slice %51 {offsets = [0, 0], sizes = [8, 32], strides = [1, 1]} : vector<8x128xf32> to vector<8x32xf32>
    %54 = vector.extract_strided_slice %51 {offsets = [0, 32], sizes = [8, 32], strides = [1, 1]} : vector<8x128xf32> to vector<8x32xf32>
    %55 = vector.extract_strided_slice %52 {offsets = [0, 64], sizes = [8, 32], strides = [1, 1]} : vector<8x128xf32> to vector<8x32xf32>
    %56 = vector.extract_strided_slice %51 {offsets = [0, 96], sizes = [8, 32], strides = [1, 1]} : vector<8x128xf32> to vector<8x32xf32>
    %57 = arith.mulf %54, %42 : vector<8x32xf32>
    %58 = arith.mulf %53, %55 : vector<8x32xf32>
    %59 = arith.addf %57, %58 : vector<8x32xf32>
    %60 = math.tanh %59 : vector<8x32xf32>
    %61 = arith.mulf %56, %60 : vector<8x32xf32>
    %c1_i32 = arith.constant 1 : i32
    %62 = arith.addi %12, %c1_i32 : i32
    %63 = vector.broadcast %62 : i32 to vector<8x1xi32>
    %64 = arith.cmpi slt, %63, %11 : vector<8x1xi32>
    %65 = vector.shape_cast %64 : vector<8x1xi1> to vector<8x1xi1>
    %66 = vector.broadcast %65 : vector<8x1xi1> to vector<8x32xi1>
    %67 = arith.select %66, %61, %39 : vector<8x32xi1>, vector<8x32xf32>
    %68 = vector.shape_cast %64 : vector<8x1xi1> to vector<8x1xi1>
    %69 = vector.broadcast %68 : vector<8x1xi1> to vector<8x32xi1>
    %70 = arith.select %69, %59, %42 : vector<8x32xi1>, vector<8x32xf32>
    %71 = vector.extract_strided_slice %9 {offsets = [16, 0], sizes = [8, 128], strides = [1, 1]} : vector<64x128xf32> to vector<8x128xf32>
    %72 = arith.truncf %67 : vector<8x32xf32> to vector<8x32xbf16>
    %cst_21 = arith.constant dense<0.000000e+00> : vector<8x128xf32>
    %73 = tpu.matmul %72, %10, %cst_21 {dimension_numbers = #tpu.dot_dimension_numbers<[1], [0], [0], [1], [0, 0, 1, 1], [], []>} : vector<8x32xbf16>, vector<32x128xbf16>, vector<8x128xf32> -> vector<8x128xf32>
    %74 = arith.addf %71, %73 : vector<8x128xf32>
    %75 = arith.negf %74 : vector<8x128xf32>
    %76 = math.exp %75 : vector<8x128xf32>
    %cst_22 = arith.constant 1.000000e+00 : f32
    %77 = vector.broadcast %cst_22 : f32 to vector<8x128xf32>
    %78 = arith.addf %77, %76 : vector<8x128xf32>
    %79 = arith.divf %77, %78 : vector<8x128xf32>
    %80 = math.tanh %74 : vector<8x128xf32>
    %81 = vector.extract_strided_slice %79 {offsets = [0, 0], sizes = [8, 32], strides = [1, 1]} : vector<8x128xf32> to vector<8x32xf32>
    %82 = vector.extract_strided_slice %79 {offsets = [0, 32], sizes = [8, 32], strides = [1, 1]} : vector<8x128xf32> to vector<8x32xf32>
    %83 = vector.extract_strided_slice %80 {offsets = [0, 64], sizes = [8, 32], strides = [1, 1]} : vector<8x128xf32> to vector<8x32xf32>
    %84 = vector.extract_strided_slice %79 {offsets = [0, 96], sizes = [8, 32], strides = [1, 1]} : vector<8x128xf32> to vector<8x32xf32>
    %85 = arith.mulf %82, %70 : vector<8x32xf32>
    %86 = arith.mulf %81, %83 : vector<8x32xf32>
    %87 = arith.addf %85, %86 : vector<8x32xf32>
    %88 = math.tanh %87 : vector<8x32xf32>
    %89 = arith.mulf %84, %88 : vector<8x32xf32>
    %c2_i32 = arith.constant 2 : i32
    %90 = arith.addi %12, %c2_i32 : i32
    %91 = vector.broadcast %90 : i32 to vector<8x1xi32>
    %92 = arith.cmpi slt, %91, %11 : vector<8x1xi32>
    %93 = vector.shape_cast %92 : vector<8x1xi1> to vector<8x1xi1>
    %94 = vector.broadcast %93 : vector<8x1xi1> to vector<8x32xi1>
    %95 = arith.select %94, %89, %67 : vector<8x32xi1>, vector<8x32xf32>
    %96 = vector.shape_cast %92 : vector<8x1xi1> to vector<8x1xi1>
    %97 = vector.broadcast %96 : vector<8x1xi1> to vector<8x32xi1>
    %98 = arith.select %97, %87, %70 : vector<8x32xi1>, vector<8x32xf32>
    %99 = vector.extract_strided_slice %9 {offsets = [24, 0], sizes = [8, 128], strides = [1, 1]} : vector<64x128xf32> to vector<8x128xf32>
    %100 = arith.truncf %95 : vector<8x32xf32> to vector<8x32xbf16>
    %cst_23 = arith.constant dense<0.000000e+00> : vector<8x128xf32>
    %101 = tpu.matmul %100, %10, %cst_23 {dimension_numbers = #tpu.dot_dimension_numbers<[1], [0], [0], [1], [0, 0, 1, 1], [], []>} : vector<8x32xbf16>, vector<32x128xbf16>, vector<8x128xf32> -> vector<8x128xf32>
    %102 = arith.addf %99, %101 : vector<8x128xf32>
    %103 = arith.negf %102 : vector<8x128xf32>
    %104 = math.exp %103 : vector<8x128xf32>
    %cst_24 = arith.constant 1.000000e+00 : f32
    %105 = vector.broadcast %cst_24 : f32 to vector<8x128xf32>
    %106 = arith.addf %105, %104 : vector<8x128xf32>
    %107 = arith.divf %105, %106 : vector<8x128xf32>
    %108 = math.tanh %102 : vector<8x128xf32>
    %109 = vector.extract_strided_slice %107 {offsets = [0, 0], sizes = [8, 32], strides = [1, 1]} : vector<8x128xf32> to vector<8x32xf32>
    %110 = vector.extract_strided_slice %107 {offsets = [0, 32], sizes = [8, 32], strides = [1, 1]} : vector<8x128xf32> to vector<8x32xf32>
    %111 = vector.extract_strided_slice %108 {offsets = [0, 64], sizes = [8, 32], strides = [1, 1]} : vector<8x128xf32> to vector<8x32xf32>
    %112 = vector.extract_strided_slice %107 {offsets = [0, 96], sizes = [8, 32], strides = [1, 1]} : vector<8x128xf32> to vector<8x32xf32>
    %113 = arith.mulf %110, %98 : vector<8x32xf32>
    %114 = arith.mulf %109, %111 : vector<8x32xf32>
    %115 = arith.addf %113, %114 : vector<8x32xf32>
    %116 = math.tanh %115 : vector<8x32xf32>
    %117 = arith.mulf %112, %116 : vector<8x32xf32>
    %c3_i32 = arith.constant 3 : i32
    %118 = arith.addi %12, %c3_i32 : i32
    %119 = vector.broadcast %118 : i32 to vector<8x1xi32>
    %120 = arith.cmpi slt, %119, %11 : vector<8x1xi32>
    %121 = vector.shape_cast %120 : vector<8x1xi1> to vector<8x1xi1>
    %122 = vector.broadcast %121 : vector<8x1xi1> to vector<8x32xi1>
    %123 = arith.select %122, %117, %95 : vector<8x32xi1>, vector<8x32xf32>
    %124 = vector.shape_cast %120 : vector<8x1xi1> to vector<8x1xi1>
    %125 = vector.broadcast %124 : vector<8x1xi1> to vector<8x32xi1>
    %126 = arith.select %125, %115, %98 : vector<8x32xi1>, vector<8x32xf32>
    %127 = vector.extract_strided_slice %9 {offsets = [32, 0], sizes = [8, 128], strides = [1, 1]} : vector<64x128xf32> to vector<8x128xf32>
    %128 = arith.truncf %123 : vector<8x32xf32> to vector<8x32xbf16>
    %cst_25 = arith.constant dense<0.000000e+00> : vector<8x128xf32>
    %129 = tpu.matmul %128, %10, %cst_25 {dimension_numbers = #tpu.dot_dimension_numbers<[1], [0], [0], [1], [0, 0, 1, 1], [], []>} : vector<8x32xbf16>, vector<32x128xbf16>, vector<8x128xf32> -> vector<8x128xf32>
    %130 = arith.addf %127, %129 : vector<8x128xf32>
    %131 = arith.negf %130 : vector<8x128xf32>
    %132 = math.exp %131 : vector<8x128xf32>
    %cst_26 = arith.constant 1.000000e+00 : f32
    %133 = vector.broadcast %cst_26 : f32 to vector<8x128xf32>
    %134 = arith.addf %133, %132 : vector<8x128xf32>
    %135 = arith.divf %133, %134 : vector<8x128xf32>
    %136 = math.tanh %130 : vector<8x128xf32>
    %137 = vector.extract_strided_slice %135 {offsets = [0, 0], sizes = [8, 32], strides = [1, 1]} : vector<8x128xf32> to vector<8x32xf32>
    %138 = vector.extract_strided_slice %135 {offsets = [0, 32], sizes = [8, 32], strides = [1, 1]} : vector<8x128xf32> to vector<8x32xf32>
    %139 = vector.extract_strided_slice %136 {offsets = [0, 64], sizes = [8, 32], strides = [1, 1]} : vector<8x128xf32> to vector<8x32xf32>
    %140 = vector.extract_strided_slice %135 {offsets = [0, 96], sizes = [8, 32], strides = [1, 1]} : vector<8x128xf32> to vector<8x32xf32>
    %141 = arith.mulf %138, %126 : vector<8x32xf32>
    %142 = arith.mulf %137, %139 : vector<8x32xf32>
    %143 = arith.addf %141, %142 : vector<8x32xf32>
    %144 = math.tanh %143 : vector<8x32xf32>
    %145 = arith.mulf %140, %144 : vector<8x32xf32>
    %c4_i32 = arith.constant 4 : i32
    %146 = arith.addi %12, %c4_i32 : i32
    %147 = vector.broadcast %146 : i32 to vector<8x1xi32>
    %148 = arith.cmpi slt, %147, %11 : vector<8x1xi32>
    %149 = vector.shape_cast %148 : vector<8x1xi1> to vector<8x1xi1>
    %150 = vector.broadcast %149 : vector<8x1xi1> to vector<8x32xi1>
    %151 = arith.select %150, %145, %123 : vector<8x32xi1>, vector<8x32xf32>
    %152 = vector.shape_cast %148 : vector<8x1xi1> to vector<8x1xi1>
    %153 = vector.broadcast %152 : vector<8x1xi1> to vector<8x32xi1>
    %154 = arith.select %153, %143, %126 : vector<8x32xi1>, vector<8x32xf32>
    %155 = vector.extract_strided_slice %9 {offsets = [40, 0], sizes = [8, 128], strides = [1, 1]} : vector<64x128xf32> to vector<8x128xf32>
    %156 = arith.truncf %151 : vector<8x32xf32> to vector<8x32xbf16>
    %cst_27 = arith.constant dense<0.000000e+00> : vector<8x128xf32>
    %157 = tpu.matmul %156, %10, %cst_27 {dimension_numbers = #tpu.dot_dimension_numbers<[1], [0], [0], [1], [0, 0, 1, 1], [], []>} : vector<8x32xbf16>, vector<32x128xbf16>, vector<8x128xf32> -> vector<8x128xf32>
    %158 = arith.addf %155, %157 : vector<8x128xf32>
    %159 = arith.negf %158 : vector<8x128xf32>
    %160 = math.exp %159 : vector<8x128xf32>
    %cst_28 = arith.constant 1.000000e+00 : f32
    %161 = vector.broadcast %cst_28 : f32 to vector<8x128xf32>
    %162 = arith.addf %161, %160 : vector<8x128xf32>
    %163 = arith.divf %161, %162 : vector<8x128xf32>
    %164 = math.tanh %158 : vector<8x128xf32>
    %165 = vector.extract_strided_slice %163 {offsets = [0, 0], sizes = [8, 32], strides = [1, 1]} : vector<8x128xf32> to vector<8x32xf32>
    %166 = vector.extract_strided_slice %163 {offsets = [0, 32], sizes = [8, 32], strides = [1, 1]} : vector<8x128xf32> to vector<8x32xf32>
    %167 = vector.extract_strided_slice %164 {offsets = [0, 64], sizes = [8, 32], strides = [1, 1]} : vector<8x128xf32> to vector<8x32xf32>
    %168 = vector.extract_strided_slice %163 {offsets = [0, 96], sizes = [8, 32], strides = [1, 1]} : vector<8x128xf32> to vector<8x32xf32>
    %169 = arith.mulf %166, %154 : vector<8x32xf32>
    %170 = arith.mulf %165, %167 : vector<8x32xf32>
    %171 = arith.addf %169, %170 : vector<8x32xf32>
    %172 = math.tanh %171 : vector<8x32xf32>
    %173 = arith.mulf %168, %172 : vector<8x32xf32>
    %c5_i32 = arith.constant 5 : i32
    %174 = arith.addi %12, %c5_i32 : i32
    %175 = vector.broadcast %174 : i32 to vector<8x1xi32>
    %176 = arith.cmpi slt, %175, %11 : vector<8x1xi32>
    %177 = vector.shape_cast %176 : vector<8x1xi1> to vector<8x1xi1>
    %178 = vector.broadcast %177 : vector<8x1xi1> to vector<8x32xi1>
    %179 = arith.select %178, %173, %151 : vector<8x32xi1>, vector<8x32xf32>
    %180 = vector.shape_cast %176 : vector<8x1xi1> to vector<8x1xi1>
    %181 = vector.broadcast %180 : vector<8x1xi1> to vector<8x32xi1>
    %182 = arith.select %181, %171, %154 : vector<8x32xi1>, vector<8x32xf32>
    %183 = vector.extract_strided_slice %9 {offsets = [48, 0], sizes = [8, 128], strides = [1, 1]} : vector<64x128xf32> to vector<8x128xf32>
    %184 = arith.truncf %179 : vector<8x32xf32> to vector<8x32xbf16>
    %cst_29 = arith.constant dense<0.000000e+00> : vector<8x128xf32>
    %185 = tpu.matmul %184, %10, %cst_29 {dimension_numbers = #tpu.dot_dimension_numbers<[1], [0], [0], [1], [0, 0, 1, 1], [], []>} : vector<8x32xbf16>, vector<32x128xbf16>, vector<8x128xf32> -> vector<8x128xf32>
    %186 = arith.addf %183, %185 : vector<8x128xf32>
    %187 = arith.negf %186 : vector<8x128xf32>
    %188 = math.exp %187 : vector<8x128xf32>
    %cst_30 = arith.constant 1.000000e+00 : f32
    %189 = vector.broadcast %cst_30 : f32 to vector<8x128xf32>
    %190 = arith.addf %189, %188 : vector<8x128xf32>
    %191 = arith.divf %189, %190 : vector<8x128xf32>
    %192 = math.tanh %186 : vector<8x128xf32>
    %193 = vector.extract_strided_slice %191 {offsets = [0, 0], sizes = [8, 32], strides = [1, 1]} : vector<8x128xf32> to vector<8x32xf32>
    %194 = vector.extract_strided_slice %191 {offsets = [0, 32], sizes = [8, 32], strides = [1, 1]} : vector<8x128xf32> to vector<8x32xf32>
    %195 = vector.extract_strided_slice %192 {offsets = [0, 64], sizes = [8, 32], strides = [1, 1]} : vector<8x128xf32> to vector<8x32xf32>
    %196 = vector.extract_strided_slice %191 {offsets = [0, 96], sizes = [8, 32], strides = [1, 1]} : vector<8x128xf32> to vector<8x32xf32>
    %197 = arith.mulf %194, %182 : vector<8x32xf32>
    %198 = arith.mulf %193, %195 : vector<8x32xf32>
    %199 = arith.addf %197, %198 : vector<8x32xf32>
    %200 = math.tanh %199 : vector<8x32xf32>
    %201 = arith.mulf %196, %200 : vector<8x32xf32>
    %c6_i32 = arith.constant 6 : i32
    %202 = arith.addi %12, %c6_i32 : i32
    %203 = vector.broadcast %202 : i32 to vector<8x1xi32>
    %204 = arith.cmpi slt, %203, %11 : vector<8x1xi32>
    %205 = vector.shape_cast %204 : vector<8x1xi1> to vector<8x1xi1>
    %206 = vector.broadcast %205 : vector<8x1xi1> to vector<8x32xi1>
    %207 = arith.select %206, %201, %179 : vector<8x32xi1>, vector<8x32xf32>
    %208 = vector.shape_cast %204 : vector<8x1xi1> to vector<8x1xi1>
    %209 = vector.broadcast %208 : vector<8x1xi1> to vector<8x32xi1>
    %210 = arith.select %209, %199, %182 : vector<8x32xi1>, vector<8x32xf32>
    %211 = vector.extract_strided_slice %9 {offsets = [56, 0], sizes = [8, 128], strides = [1, 1]} : vector<64x128xf32> to vector<8x128xf32>
    %212 = arith.truncf %207 : vector<8x32xf32> to vector<8x32xbf16>
    %cst_31 = arith.constant dense<0.000000e+00> : vector<8x128xf32>
    %213 = tpu.matmul %212, %10, %cst_31 {dimension_numbers = #tpu.dot_dimension_numbers<[1], [0], [0], [1], [0, 0, 1, 1], [], []>} : vector<8x32xbf16>, vector<32x128xbf16>, vector<8x128xf32> -> vector<8x128xf32>
    %214 = arith.addf %211, %213 : vector<8x128xf32>
    %215 = arith.negf %214 : vector<8x128xf32>
    %216 = math.exp %215 : vector<8x128xf32>
    %cst_32 = arith.constant 1.000000e+00 : f32
    %217 = vector.broadcast %cst_32 : f32 to vector<8x128xf32>
    %218 = arith.addf %217, %216 : vector<8x128xf32>
    %219 = arith.divf %217, %218 : vector<8x128xf32>
    %220 = math.tanh %214 : vector<8x128xf32>
    %221 = vector.extract_strided_slice %219 {offsets = [0, 0], sizes = [8, 32], strides = [1, 1]} : vector<8x128xf32> to vector<8x32xf32>
    %222 = vector.extract_strided_slice %219 {offsets = [0, 32], sizes = [8, 32], strides = [1, 1]} : vector<8x128xf32> to vector<8x32xf32>
    %223 = vector.extract_strided_slice %220 {offsets = [0, 64], sizes = [8, 32], strides = [1, 1]} : vector<8x128xf32> to vector<8x32xf32>
    %224 = vector.extract_strided_slice %219 {offsets = [0, 96], sizes = [8, 32], strides = [1, 1]} : vector<8x128xf32> to vector<8x32xf32>
    %225 = arith.mulf %222, %210 : vector<8x32xf32>
    %226 = arith.mulf %221, %223 : vector<8x32xf32>
    %227 = arith.addf %225, %226 : vector<8x32xf32>
    %228 = math.tanh %227 : vector<8x32xf32>
    %229 = arith.mulf %224, %228 : vector<8x32xf32>
    %c7_i32 = arith.constant 7 : i32
    %230 = arith.addi %12, %c7_i32 : i32
    %231 = vector.broadcast %230 : i32 to vector<8x1xi32>
    %232 = arith.cmpi slt, %231, %11 : vector<8x1xi32>
    %233 = vector.shape_cast %232 : vector<8x1xi1> to vector<8x1xi1>
    %234 = vector.broadcast %233 : vector<8x1xi1> to vector<8x32xi1>
    %235 = arith.select %234, %229, %207 : vector<8x32xi1>, vector<8x32xf32>
    %236 = vector.shape_cast %232 : vector<8x1xi1> to vector<8x1xi1>
    %237 = vector.broadcast %236 : vector<8x1xi1> to vector<8x32xi1>
    %238 = arith.select %237, %227, %210 : vector<8x32xi1>, vector<8x32xf32>
    %c0_33 = arith.constant 0 : index
    %c0_34 = arith.constant 0 : index
    %239 = vector.load %arg10[%c0_33, %c0_34] : memref<8x32xf32, #tpu.memory_space<vmem>>, vector<8x32xf32>
    tpu.vector_store %arg10[%c0_33, %c0_34], %235 {strides = array<i32>} : memref<8x32xf32, #tpu.memory_space<vmem>>, vector<8x32xf32>,
    %c0_35 = arith.constant 0 : index
    %c0_36 = arith.constant 0 : index
    %240 = vector.load %arg11[%c0_35, %c0_36] : memref<8x32xf32, #tpu.memory_space<vmem>>, vector<8x32xf32>
    tpu.vector_store %arg11[%c0_35, %c0_36], %238 {strides = array<i32>} : memref<8x32xf32, #tpu.memory_space<vmem>>, vector<8x32xf32>,
    %c0_i32_37 = arith.constant 0 : i32
    %241 = arith.cmpi eq, %arg1, %c0_i32_37 : i32
    %242 = arith.extui %241 : i1 to i32
    %c0_i32_38 = arith.constant 0 : i32
    %243 = arith.cmpi ne, %242, %c0_i32_38 : i32
    scf.if %243 {
      %244 = arith.truncf %235 : vector<8x32xf32> to vector<8x32xbf16>
      %c0_39 = arith.constant 0 : index
      %c0_40 = arith.constant 0 : index
      %245 = vector.load %arg7[%c0_39, %c0_40] : memref<32x128xbf16, #tpu.memory_space<vmem>>, vector<32x128xbf16>
      %cst_41 = arith.constant dense<0.000000e+00> : vector<8x128xf32>
      %246 = tpu.matmul %244, %245, %cst_41 {dimension_numbers = #tpu.dot_dimension_numbers<[1], [0], [0], [1], [0, 0, 1, 1], [], []>} : vector<8x32xbf16>, vector<32x128xbf16>, vector<8x128xf32> -> vector<8x128xf32>
      %c0_42 = arith.constant 0 : index
      %c0_43 = arith.constant 0 : index
      %247 = vector.load %arg8[%c0_42, %c0_43] : memref<1x128xf32, #tpu.memory_space<vmem>>, vector<1x128xf32>
      %248 = vector.broadcast %247 : vector<1x128xf32> to vector<8x128xf32>
      %249 = arith.addf %246, %248 : vector<8x128xf32>
      %c0_44 = arith.constant 0 : index
      %c0_45 = arith.constant 0 : index
      %250 = vector.load %arg9[%c0_44, %c0_45] : memref<8x128xf32, #tpu.memory_space<vmem>>, vector<8x128xf32>
      tpu.vector_store %arg9[%c0_44, %c0_45], %249 {strides = array<i32>} : memref<8x128xf32, #tpu.memory_space<vmem>>, vector<8x128xf32>,
    } else {
    }
    return
  }
  func.func @transform_0(%arg0: i32, %arg1: i32) -> (i32, i32) {
    %c0_i32 = arith.constant 0 : i32
    %c0_i32_0 = arith.constant 0 : i32
    return %arg0, %c0_i32 : i32, i32
  }
  func.func @transform_1(%arg0: i32, %arg1: i32) -> (i32, i32, i32, i32) {
    %c0_i32 = arith.constant 0 : i32
    %c0_i32_0 = arith.constant 0 : i32
    %c0_i32_1 = arith.constant 0 : i32
    return %arg1, %arg0, %c0_i32, %c0_i32_0 : i32, i32, i32, i32
  }
  func.func @transform_2(%arg0: i32, %arg1: i32) -> (i32, i32) {
    %c0_i32 = arith.constant 0 : i32
    %c0_i32_0 = arith.constant 0 : i32
    %c0_i32_1 = arith.constant 0 : i32
    return %c0_i32, %c0_i32_0 : i32, i32
  }
  func.func @transform_3(%arg0: i32, %arg1: i32) -> (i32, i32) {
    %c0_i32 = arith.constant 0 : i32
    %c0_i32_0 = arith.constant 0 : i32
    %c0_i32_1 = arith.constant 0 : i32
    return %c0_i32, %c0_i32_0 : i32, i32
  }
  func.func @transform_4(%arg0: i32, %arg1: i32) -> (i32, i32) {
    %c0_i32 = arith.constant 0 : i32
    %c0_i32_0 = arith.constant 0 : i32
    %c0_i32_1 = arith.constant 0 : i32
    return %c0_i32, %c0_i32_0 : i32, i32
  }
  func.func @transform_5(%arg0: i32, %arg1: i32) -> (i32, i32) {
    %c0_i32 = arith.constant 0 : i32
    %c0_i32_0 = arith.constant 0 : i32
    %c0_i32_1 = arith.constant 0 : i32
    return %c0_i32, %c0_i32_0 : i32, i32
  }
  func.func @transform_6(%arg0: i32, %arg1: i32) -> (i32, i32) {
    %c0_i32 = arith.constant 0 : i32
    %c0_i32_0 = arith.constant 0 : i32
    %c0_i32_1 = arith.constant 0 : i32
    return %c0_i32, %c0_i32_0 : i32, i32
  }
  func.func @transform_7(%arg0: i32, %arg1: i32) -> (i32, i32) {
    %c0_i32 = arith.constant 0 : i32
    %c0_i32_0 = arith.constant 0 : i32
    return %arg0, %c0_i32 : i32, i32
  }
}

</mosaic_0001>

<llo_original>
// kernel: tpu_custom_call.1
$region0: #{tpu_custom_call.1}
  #allocation0 [shape = 'u32[]', space=smem, size = 0x4, offset = 0x4, fixed_abs, tag = 'smem constant byte address 0x4 - core index']
  #allocation1 [shape = 'u32[144,128]{1,0:T(1,128)}', space=vmem, size = 0x12000, scoped, tag = 'internal scratch']
  #allocation2 [shape = 'f32[8,32]{1,0:T(8,128)}', space=vmem, size = 0x1000, scoped, tag = 'scratch operand']
  #allocation3 [shape = 'f32[8,32]{1,0:T(8,128)}', space=vmem, size = 0x1000, scoped, tag = 'scratch operand']
  %s0 = inlined_call_operand.vmem [shape: s32[8,1], index: 0, kind: input, shape index: {}]
  %s1 = inlined_call_operand.vmem [shape: bf16[1,1,64,32], index: 1, kind: input, shape index: {}]
  %s2 = inlined_call_operand.vmem [shape: bf16[32,128], index: 2, kind: input, shape index: {}]
  %s3 = inlined_call_operand.vmem [shape: bf16[32,128], index: 3, kind: input, shape index: {}]
  %s4 = inlined_call_operand.vmem [shape: f32[1,128], index: 4, kind: input, shape index: {}]
  %s5 = inlined_call_operand.vmem [shape: bf16[32,128], index: 5, kind: input, shape index: {}]
  %s6 = inlined_call_operand.vmem [shape: f32[1,128], index: 6, kind: input, shape index: {}]
  %s7 = inlined_call_operand.hbm [shape: f32[8,128], index: 7, kind: output, shape index: {}]
  %s8 = sld [smem:[#allocation0]]
  $region46: #{tpu_custom_call.1} parent=0
    _
  %s10 = ssub.s32 1, %s8
  %s11 = scalar_select 0, %s10, %s8
  $region1: #{tpu_custom_call.1} parent=0
    #allocation4 [shape = 'u8[4096]{0}', space=vmem, size = 0x1000, scoped, tag = 'output window, operand 0, single buffered']
    #allocation5 [shape = 's32[1]{0}', space=sflag, size = 0x4, scoped, tag = 'scoped memory for tpu_custom_call.1']
    %12 = vsyncpa [#allocation5], 0
    // Predicated region
    $region2: #{tpu_custom_call.1} parent=1 // pred_check
      _
    $region3: #{tpu_custom_call.1} parent=1 // pred_check_branch
      %14 = sbr.rel (0) target = $region5
    $region4: #{tpu_custom_call.1} parent=1 // pred_region
      _
    $region5: #{tpu_custom_call.1} parent=1 // pred_fallthru
      _
    // Predicated region
    $region6: #{tpu_custom_call.1} parent=1 // pred_check
      _
    $region7: #{tpu_custom_call.1} parent=1 // pred_check_branch
      %16 = sbr.rel (0) target = $region9
    $region8: #{tpu_custom_call.1} parent=1 // pred_region
      _
    $region9: #{tpu_custom_call.1} parent=1 // pred_fallthru
      _
    // Predicated region
    $region10: #{tpu_custom_call.1} parent=1 // pred_check
      _
    $region11: #{tpu_custom_call.1} parent=1 // pred_check_branch
      %18 = sbr.rel (0) target = $region13
    $region12: #{tpu_custom_call.1} parent=1 // pred_region
      _
    $region13: #{tpu_custom_call.1} parent=1 // pred_fallthru
      _
    // Predicated region
    $region14: #{tpu_custom_call.1} parent=1 // pred_check
      _
    $region15: #{tpu_custom_call.1} parent=1 // pred_check_branch
      %20 = sbr.rel (0) target = $region17
    $region16: #{tpu_custom_call.1} parent=1 // pred_region
      _
    $region17: #{tpu_custom_call.1} parent=1 // pred_fallthru
      _
    // Predicated region
    $region18: #{tpu_custom_call.1} parent=1 // pred_check
      _
    $region19: #{tpu_custom_call.1} parent=1 // pred_check_branch
      %22 = sbr.rel (0) target = $region21
    $region20: #{tpu_custom_call.1} parent=1 // pred_region
      _
    $region21: #{tpu_custom_call.1} parent=1 // pred_fallthru
      _
    // Predicated region
    $region22: #{tpu_custom_call.1} parent=1 // pred_check
      _
    $region23: #{tpu_custom_call.1} parent=1 // pred_check_branch
      %24 = sbr.rel (0) target = $region25
    $region24: #{tpu_custom_call.1} parent=1 // pred_region
      _
    $region25: #{tpu_custom_call.1} parent=1 // pred_fallthru
      _
    // Predicated region
    $region26: #{tpu_custom_call.1} parent=1 // pred_check
      _
    $region27: #{tpu_custom_call.1} parent=1 // pred_check_branch
      %26 = sbr.rel (0) target = $region29
    $region28: #{tpu_custom_call.1} parent=1 // pred_region
      _
    $region29: #{tpu_custom_call.1} parent=1 // pred_fallthru
      _
    %p28 = scmp.eq.s32.totalorder 0, 0
    // Predicated region
    $region30: #{tpu_custom_call.1} parent=1 // pred_check
      %p29 = pneg %p28
    $region31: #{tpu_custom_call.1} parent=1 // pred_check_branch
      %31 = sbr.rel (%p29) target = $region33
    $region32: #{tpu_custom_call.1} parent=1 // pred_region
      %vm32 = vcmask 261120
      %33 = vst.msk [vmem:[#allocation2] sm:$0xff] %vm32, 0.0
      %34 = vst.msk [vmem:[#allocation3] sm:$0xff] %vm32, 0.0
    $region33: #{tpu_custom_call.1} parent=1 // pred_fallthru
      _
    %v35 = vld [vmem:[%s1] sm:$0xf]
    %v36 = vld [vmem:[%s1 + $0x4] sm:$0xf]
    %v37 = vld [vmem:[%s1 + $0x8] sm:$0xf]
    %v38 = vld [vmem:[%s1 + $0xc] sm:$0xf]
    %v39 = vld [vmem:[%s1 + $0x10] sm:$0xf]
    %v40 = vld [vmem:[%s1 + $0x14] sm:$0xf]
    %v41 = vld [vmem:[%s1 + $0x18] sm:$0xf]
    %v42 = vld [vmem:[%s1 + $0x1c] sm:$0xf]
    %v43 = vld [vmem:[%s2] sm:$0xf]
    %v44 = vld [vmem:[%s2 + $0x4] sm:$0xf]
    %v45 = vld [vmem:[%s2 + $0x8] sm:$0xf]
    %v46 = vld [vmem:[%s2 + $0xc] sm:$0xf]
    %v47 = vld [vmem:[%s4] sm:$0x1]
    %v49 = vlaneseq
    %v50 = vshrl.u32 %v49, 7
    %v51 = vsub.s32 0, %v50
    %v52 = vrot.slane %v47, %v51
    %v62 = vunpack.c.l.b16 %v35
    %v63 = vunpack.c.l.b16 %v36
    %v64 = vunpack.c.l.b16 %v37
    %v65 = vunpack.c.l.b16 %v38
    %v66 = vunpack.c.l.b16 %v39
    %v67 = vunpack.c.l.b16 %v40
    %v68 = vunpack.c.l.b16 %v41
    %v69 = vunpack.c.l.b16 %v42
    %v70 = vpack.c.b16 %v63, %v62
    %v71 = vpack.c.b16 %v65, %v64
    %v72 = vpack.c.b16 %v67, %v66
    %v73 = vpack.c.b16 %v69, %v68
    %v78 = vunpack.c.l.b16 %v43
    %v79 = vunpack.c.l.b16 %v44
    %v80 = vunpack.c.l.b16 %v45
    %v81 = vunpack.c.l.b16 %v46
    %v82 = vpack.c.b16 %v79, %v78
    %v83 = vpack.c.b16 %v81, %v80
    %vm86 = vcmask 261120
    %v88 = vsel %vm86, %v70, 0
    %v91 = vsel %vm86, %v71, 0
    %v94 = vsel %vm86, %v72, 0
    %v97 = vsel %vm86, %v73, 0
    %99 = vmatprep.subr.bf16.mxu0 0
    %100 = vmatpush1.bf16.msra.mxu0 %v82
    %101 = vmatprep.subr.bf16.mxu0 0
    %102 = vmatpush1.bf16.msra.mxu0 %v83
    %103 = vmatprep.subr.bf16.mxu0 0
    %104 = vmatpush1.bf16.msra.mxu0 0
    %105 = vmatprep.subr.bf16.mxu0 0
    %106 = vmatpush1.bf16.msra.mxu0 0
    %107 = vmatprep.subr.bf16.mxu0 0
    %108 = vmatpush1.bf16.msra.mxu0 0
    %109 = vmatprep.subr.bf16.mxu0 0
    %110 = vmatpush1.bf16.msra.mxu0 0
    %111 = vmatprep.subr.bf16.mxu0 0
    %112 = vmatpush1.bf16.msra.mxu0 0
    %113 = vmatprep.subr.bf16.mxu0 0
    %114 = vmatpush1.bf16.msra.mxu0 0
    %115 = vmatprep.subr.bf16.mxu0 0
    %116 = vmatpush1.bf16.msra.mxu0 0
    %117 = vmatprep.subr.bf16.mxu0 0
    %118 = vmatpush1.bf16.msra.mxu0 0
    %119 = vmatprep.subr.bf16.mxu0 0
    %120 = vmatpush1.bf16.msra.mxu0 0
    %121 = vmatprep.subr.bf16.mxu0 0
    %122 = vmatpush1.bf16.msra.mxu0 0
    %123 = vmatprep.subr.bf16.mxu0 0
    %124 = vmatpush1.bf16.msra.mxu0 0
    %125 = vmatprep.subr.bf16.mxu0 0
    %126 = vmatpush1.bf16.msra.mxu0 0
    %127 = vmatprep.subr.bf16.mxu0 0
    %128 = vmatpush1.bf16.msra.mxu0 0
    %129 = vmatprep.subr.bf16.mxu0 0
    %130 = vmatpush1.bf16.msra.mxu0 0
    %131 = vmatprep.mubr.bf16.mxu0 0
    %132 = vmatmul.mubr.bf16.gmra.mrb[0].mxu0 %v88
    %v133 = vpop.f32.mrb[0].mxu0
    %v134 = vadd.f32 %v52, %v133
    %v135 = vpop.f32.mrb[0].mxu0
    %v136 = vpop.f32.mrb[0].mxu0
    %v137 = vadd.f32 %v52, %v136
    %v138 = vpop.f32.mrb[0].mxu0
    %139 = vmatprep.mubr.bf16.mxu0 0
    %140 = vmatmul.mubr.bf16.gmra.mrb[0].mxu0 %v91
    %v141 = vpop.f32.mrb[0].mxu0
    %v142 = vadd.f32 %v52, %v141
    %v143 = vpop.f32.mrb[0].mxu0
    %v144 = vpop.f32.mrb[0].mxu0
    %v145 = vadd.f32 %v52, %v144
    %v146 = vpop.f32.mrb[0].mxu0
    %147 = vmatprep.mubr.bf16.mxu0 0
    %148 = vmatmul.mubr.bf16.gmra.mrb[0].mxu0 %v94
    %v149 = vpop.f32.mrb[0].mxu0
    %v150 = vadd.f32 %v52, %v149
    %v151 = vpop.f32.mrb[0].mxu0
    %v152 = vpop.f32.mrb[0].mxu0
    %v153 = vadd.f32 %v52, %v152
    %v154 = vpop.f32.mrb[0].mxu0
    %155 = vmatprep.mubr.bf16.mxu0 0
    %156 = vmatmul.mubr.bf16.gmra.mrb[0].mxu0 %v97
    %v157 = vpop.f32.mrb[0].mxu0
    %v158 = vadd.f32 %v52, %v157
    %v159 = vpop.f32.mrb[0].mxu0
    %v160 = vpop.f32.mrb[0].mxu0
    %v161 = vadd.f32 %v52, %v160
    %v162 = vpop.f32.mrb[0].mxu0
    %163 = vdwg.mxu0
    %v164 = vld [vmem:[%s3] sm:$0xf]
    %v165 = vld [vmem:[%s3 + $0x4] sm:$0xf]
    %v166 = vld [vmem:[%s3 + $0x8] sm:$0xf]
    %v167 = vld [vmem:[%s3 + $0xc] sm:$0xf]
    %v168 = vld [vmem:[%s0] sm:$0xff]
    %s169 = smul.u32 0, 8
    %v170 = vld [vmem:[#allocation2] sm:$0xff]
    %v171 = vld [vmem:[#allocation3] sm:$0xff]
    %v172 = vpack.c.bf16 %v170, %v170
    %v177 = vunpack.c.l.b16 %v164
    %v178 = vunpack.c.l.b16 %v165
    %v179 = vunpack.c.l.b16 %v166
    %v180 = vunpack.c.l.b16 %v167
    %v181 = vpack.c.b16 %v178, %v177
    %v182 = vpack.c.b16 %v180, %v179
    %v186 = vsel %vm86, %v172, 0
    %188 = vmatprep.subr.bf16.mxu0 0
    %189 = vmatpush1.bf16.msra.mxu0 %v181
    %190 = vmatprep.subr.bf16.mxu0 0
    %191 = vmatpush1.bf16.msra.mxu0 %v182
    %192 = vmatprep.subr.bf16.mxu0 0
    %193 = vmatpush1.bf16.msra.mxu0 0
    %194 = vmatprep.subr.bf16.mxu0 0
    %195 = vmatpush1.bf16.msra.mxu0 0
    %196 = vmatprep.subr.bf16.mxu0 0
    %197 = vmatpush1.bf16.msra.mxu0 0
    %198 = vmatprep.subr.bf16.mxu0 0
    %199 = vmatpush1.bf16.msra.mxu0 0
    %200 = vmatprep.subr.bf16.mxu0 0
    %201 = vmatpush1.bf16.msra.mxu0 0
    %202 = vmatprep.subr.bf16.mxu0 0
    %203 = vmatpush1.bf16.msra.mxu0 0
    %204 = vmatprep.subr.bf16.mxu0 0
    %205 = vmatpush1.bf16.msra.mxu0 0
    %206 = vmatprep.subr.bf16.mxu0 0
    %207 = vmatpush1.bf16.msra.mxu0 0
    %208 = vmatprep.subr.bf16.mxu0 0
    %209 = vmatpush1.bf16.msra.mxu0 0
    %210 = vmatprep.subr.bf16.mxu0 0
    %211 = vmatpush1.bf16.msra.mxu0 0
    %212 = vmatprep.subr.bf16.mxu0 0
    %213 = vmatpush1.bf16.msra.mxu0 0
    %214 = vmatprep.subr.bf16.mxu0 0
    %215 = vmatpush1.bf16.msra.mxu0 0
    %216 = vmatprep.subr.bf16.mxu0 0
    %217 = vmatpush1.bf16.msra.mxu0 0
    %218 = vmatprep.subr.bf16.mxu0 0
    %219 = vmatpush1.bf16.msra.mxu0 0
    %220 = vmatprep.mubr.bf16.mxu0 0
    %221 = vmatmul.mubr.bf16.gmra.mrb[0].mxu0 %v186
    %v222 = vpop.f32.mrb[0].mxu0
    %v223 = vadd.f32 0.0, %v222
    %v224 = vpop.f32.mrb[0].mxu0
    %v225 = vpop.f32.mrb[0].mxu0
    %v226 = vpop.f32.mrb[0].mxu0
    %227 = vdwg.mxu0
    %v228 = vadd.f32 %v134, %v223
    %v229 = vxor.u32 %v228, 2147483648
    %v230 = vmul.f32 %v229, 1.442695
    %v231 = vpow.pop %v230
    %v232 = vadd.f32 %v231, 1.0
    %v233 = vrcp.pop %v232
    %v234 = vmul.f32 1.0, %v233
    %v235 = vtanh.pop %v228
    %237 = vrot.lane.b32.xlu0 %v171, 32
    %v238 = vpop.permute.xlu0 %237
    %v240 = vmul.f32 %v234, %v238
    %242 = vrot.lane.b32.xlu0 %v235, 64
    %v243 = vpop.permute.xlu0 %242
    %v245 = vmul.f32 %v234, %v243
    %247 = vrot.lane.b32.xlu0 %v245, 32
    %v248 = vpop.permute.xlu0 %247
    %v250 = vadd.f32 %v240, %v248
    %v251 = vtanh.pop %v250
    %253 = vrot.lane.b32.xlu0 %v251, 64
    %v254 = vpop.permute.xlu0 %253
    %v256 = vmul.f32 %v234, %v254
    %v257 = vstv %s169
    %vm258 = vcmp.lt.s32.totalorder %v257, %v168
    %v259 = vsel %vm258, 1, 0
    %260 = vset.pattern.permute.xlu0 0
    %261 = vperm.xlu0 %260, %v259
    %v262 = vpop.permute.xlu0 %261
    %vm263 = vcmp.eq.s32.totalorder %v262, 1
    %265 = vrot.lane.b32.xlu0 %v170, 96
    %v266 = vpop.permute.xlu0 %265
    %v268 = vsel %vm263, %v256, %v266
    %v269 = vsel %vm263, %v250, %v238
    %v270 = vpack.c.bf16 %v268, %v268
    %272 = vrot.lane.b32.xlu0 %v270, 32
    %v273 = vpop.permute.xlu0 %272
    %v275 = vsel %vm86, %v273, 0
    %277 = vmatprep.subr.bf16.mxu0 0
    %278 = vmatpush1.bf16.msra.mxu0 %v181
    %279 = vmatprep.subr.bf16.mxu0 0
    %280 = vmatpush1.bf16.msra.mxu0 %v182
    %281 = vmatprep.subr.bf16.mxu0 0
    %282 = vmatpush1.bf16.msra.mxu0 0
    %283 = vmatprep.subr.bf16.mxu0 0
    %284 = vmatpush1.bf16.msra.mxu0 0
    %285 = vmatprep.subr.bf16.mxu0 0
    %286 = vmatpush1.bf16.msra.mxu0 0
    %287 = vmatprep.subr.bf16.mxu0 0
    %288 = vmatpush1.bf16.msra.mxu0 0
    %289 = vmatprep.subr.bf16.mxu0 0
    %290 = vmatpush1.bf16.msra.mxu0 0
    %291 = vmatprep.subr.bf16.mxu0 0
    %292 = vmatpush1.bf16.msra.mxu0 0
    %293 = vmatprep.subr.bf16.mxu0 0
    %294 = vmatpush1.bf16.msra.mxu0 0
    %295 = vmatprep.subr.bf16.mxu0 0
    %296 = vmatpush1.bf16.msra.mxu0 0
    %297 = vmatprep.subr.bf16.mxu0 0
    %298 = vmatpush1.bf16.msra.mxu0 0
    %299 = vmatprep.subr.bf16.mxu0 0
    %300 = vmatpush1.bf16.msra.mxu0 0
    %301 = vmatprep.subr.bf16.mxu0 0
    %302 = vmatpush1.bf16.msra.mxu0 0
    %303 = vmatprep.subr.bf16.mxu0 0
    %304 = vmatpush1.bf16.msra.mxu0 0
    %305 = vmatprep.subr.bf16.mxu0 0
    %306 = vmatpush1.bf16.msra.mxu0 0
    %307 = vmatprep.subr.bf16.mxu0 0
    %308 = vmatpush1.bf16.msra.mxu0 0
    %309 = vmatprep.mubr.bf16.mxu0 0
    %310 = vmatmul.mubr.bf16.gmra.mrb[0].mxu0 %v275
    %v311 = vpop.f32.mrb[0].mxu0
    %v312 = vadd.f32 0.0, %v311
    %v313 = vpop.f32.mrb[0].mxu0
    %v314 = vpop.f32.mrb[0].mxu0
    %v315 = vpop.f32.mrb[0].mxu0
    %316 = vdwg.mxu0
    %v317 = vadd.f32 %v137, %v312
    %v318 = vxor.u32 %v317, 2147483648
    %v319 = vmul.f32 %v318, 1.442695
    %v320 = vpow.pop %v319
    %v321 = vadd.f32 %v320, 1.0
    %v322 = vrcp.pop %v321
    %v323 = vmul.f32 1.0, %v322
    %v324 = vtanh.pop %v317
    %v325 = vmul.f32 %v323, %v269
    %327 = vrot.lane.b32.xlu0 %v324, 64
    %v328 = vpop.permute.xlu0 %327
    %v330 = vmul.f32 %v323, %v328
    %332 = vrot.lane.b32.xlu0 %v330, 32
    %v333 = vpop.permute.xlu0 %332
    %v335 = vadd.f32 %v325, %v333
    %v336 = vtanh.pop %v335
    %338 = vrot.lane.b32.xlu0 %v336, 64
    %v339 = vpop.permute.xlu0 %338
    %v341 = vmul.f32 %v323, %v339
    %s342 = sadd.s32 %s169, 1
    %v343 = vstv %s342
    %vm344 = vcmp.lt.s32.totalorder %v343, %v168
    %v345 = vsel %vm344, 1, 0
    %346 = vset.pattern.permute.xlu0 0
    %347 = vperm.xlu0 %346, %v345
    %v348 = vpop.permute.xlu0 %347
    %vm349 = vcmp.eq.s32.totalorder %v348, 1
    %v350 = vsel %vm349, %v341, %v268
    %v351 = vsel %vm349, %v335, %v269
    %v352 = vpack.c.bf16 %v350, %v350
    %354 = vrot.lane.b32.xlu0 %v352, 32
    %v355 = vpop.permute.xlu0 %354
    %v357 = vsel %vm86, %v355, 0
    %359 = vmatprep.subr.bf16.mxu0 0
    %360 = vmatpush1.bf16.msra.mxu0 %v181
    %361 = vmatprep.subr.bf16.mxu0 0
    %362 = vmatpush1.bf16.msra.mxu0 %v182
    %363 = vmatprep.subr.bf16.mxu0 0
    %364 = vmatpush1.bf16.msra.mxu0 0
    %365 = vmatprep.subr.bf16.mxu0 0
    %366 = vmatpush1.bf16.msra.mxu0 0
    %367 = vmatprep.subr.bf16.mxu0 0
    %368 = vmatpush1.bf16.msra.mxu0 0
    %369 = vmatprep.subr.bf16.mxu0 0
    %370 = vmatpush1.bf16.msra.mxu0 0
    %371 = vmatprep.subr.bf16.mxu0 0
    %372 = vmatpush1.bf16.msra.mxu0 0
    %373 = vmatprep.subr.bf16.mxu0 0
    %374 = vmatpush1.bf16.msra.mxu0 0
    %375 = vmatprep.subr.bf16.mxu0 0
    %376 = vmatpush1.bf16.msra.mxu0 0
    %377 = vmatprep.subr.bf16.mxu0 0
    %378 = vmatpush1.bf16.msra.mxu0 0
    %379 = vmatprep.subr.bf16.mxu0 0
    %380 = vmatpush1.bf16.msra.mxu0 0
    %381 = vmatprep.subr.bf16.mxu0 0
    %382 = vmatpush1.bf16.msra.mxu0 0
    %383 = vmatprep.subr.bf16.mxu0 0
    %384 = vmatpush1.bf16.msra.mxu0 0
    %385 = vmatprep.subr.bf16.mxu0 0
    %386 = vmatpush1.bf16.msra.mxu0 0
    %387 = vmatprep.subr.bf16.mxu0 0
    %388 = vmatpush1.bf16.msra.mxu0 0
    %389 = vmatprep.subr.bf16.mxu0 0
    %390 = vmatpush1.bf16.msra.mxu0 0
    %391 = vmatprep.mubr.bf16.mxu0 0
    %392 = vmatmul.mubr.bf16.gmra.mrb[0].mxu0 %v357
    %v393 = vpop.f32.mrb[0].mxu0
    %v394 = vadd.f32 0.0, %v393
    %v395 = vpop.f32.mrb[0].mxu0
    %v396 = vpop.f32.mrb[0].mxu0
    %v397 = vpop.f32.mrb[0].mxu0
    %398 = vdwg.mxu0
    %v399 = vadd.f32 %v142, %v394
    %v400 = vxor.u32 %v399, 2147483648
    %v401 = vmul.f32 %v400, 1.442695
    %v402 = vpow.pop %v401
    %v403 = vadd.f32 %v402, 1.0
    %v404 = vrcp.pop %v403
    %v405 = vmul.f32 1.0, %v404
    %v406 = vtanh.pop %v399
    %v407 = vmul.f32 %v405, %v351
    %409 = vrot.lane.b32.xlu0 %v406, 64
    %v410 = vpop.permute.xlu0 %409
    %v412 = vmul.f32 %v405, %v410
    %414 = vrot.lane.b32.xlu0 %v412, 32
    %v415 = vpop.permute.xlu0 %414
    %v417 = vadd.f32 %v407, %v415
    %v418 = vtanh.pop %v417
    %420 = vrot.lane.b32.xlu0 %v418, 64
    %v421 = vpop.permute.xlu0 %420
    %v423 = vmul.f32 %v405, %v421
    %s424 = sadd.s32 %s169, 2
    %v425 = vstv %s424
    %vm426 = vcmp.lt.s32.totalorder %v425, %v168
    %v427 = vsel %vm426, 1, 0
    %428 = vset.pattern.permute.xlu0 0
    %429 = vperm.xlu0 %428, %v427
    %v430 = vpop.permute.xlu0 %429
    %vm431 = vcmp.eq.s32.totalorder %v430, 1
    %v432 = vsel %vm431, %v423, %v350
    %v433 = vsel %vm431, %v417, %v351
    %v434 = vpack.c.bf16 %v432, %v432
    %436 = vrot.lane.b32.xlu0 %v434, 32
    %v437 = vpop.permute.xlu0 %436
    %v439 = vsel %vm86, %v437, 0
    %441 = vmatprep.subr.bf16.mxu0 0
    %442 = vmatpush1.bf16.msra.mxu0 %v181
    %443 = vmatprep.subr.bf16.mxu0 0
    %444 = vmatpush1.bf16.msra.mxu0 %v182
    %445 = vmatprep.subr.bf16.mxu0 0
    %446 = vmatpush1.bf16.msra.mxu0 0
    %447 = vmatprep.subr.bf16.mxu0 0
    %448 = vmatpush1.bf16.msra.mxu0 0
    %449 = vmatprep.subr.bf16.mxu0 0
    %450 = vmatpush1.bf16.msra.mxu0 0
    %451 = vmatprep.subr.bf16.mxu0 0
    %452 = vmatpush1.bf16.msra.mxu0 0
    %453 = vmatprep.subr.bf16.mxu0 0
    %454 = vmatpush1.bf16.msra.mxu0 0
    %455 = vmatprep.subr.bf16.mxu0 0
    %456 = vmatpush1.bf16.msra.mxu0 0
    %457 = vmatprep.subr.bf16.mxu0 0
    %458 = vmatpush1.bf16.msra.mxu0 0
    %459 = vmatprep.subr.bf16.mxu0 0
    %460 = vmatpush1.bf16.msra.mxu0 0
    %461 = vmatprep.subr.bf16.mxu0 0
    %462 = vmatpush1.bf16.msra.mxu0 0
    %463 = vmatprep.subr.bf16.mxu0 0
    %464 = vmatpush1.bf16.msra.mxu0 0
    %465 = vmatprep.subr.bf16.mxu0 0
    %466 = vmatpush1.bf16.msra.mxu0 0
    %467 = vmatprep.subr.bf16.mxu0 0
    %468 = vmatpush1.bf16.msra.mxu0 0
    %469 = vmatprep.subr.bf16.mxu0 0
    %470 = vmatpush1.bf16.msra.mxu0 0
    %471 = vmatprep.subr.bf16.mxu0 0
    %472 = vmatpush1.bf16.msra.mxu0 0
    %473 = vmatprep.mubr.bf16.mxu0 0
    %474 = vmatmul.mubr.bf16.gmra.mrb[0].mxu0 %v439
    %v475 = vpop.f32.mrb[0].mxu0
    %v476 = vadd.f32 0.0, %v475
    %v477 = vpop.f32.mrb[0].mxu0
    %v478 = vpop.f32.mrb[0].mxu0
    %v479 = vpop.f32.mrb[0].mxu0
    %480 = vdwg.mxu0
    %v481 = vadd.f32 %v145, %v476
    %v482 = vxor.u32 %v481, 2147483648
    %v483 = vmul.f32 %v482, 1.442695
    %v484 = vpow.pop %v483
    %v485 = vadd.f32 %v484, 1.0
    %v486 = vrcp.pop %v485
    %v487 = vmul.f32 1.0, %v486
    %v488 = vtanh.pop %v481
    %v489 = vmul.f32 %v487, %v433
    %491 = vrot.lane.b32.xlu0 %v488, 64
    %v492 = vpop.permute.xlu0 %491
    %v494 = vmul.f32 %v487, %v492
    %496 = vrot.lane.b32.xlu0 %v494, 32
    %v497 = vpop.permute.xlu0 %496
    %v499 = vadd.f32 %v489, %v497
    %v500 = vtanh.pop %v499
    %502 = vrot.lane.b32.xlu0 %v500, 64
    %v503 = vpop.permute.xlu0 %502
    %v505 = vmul.f32 %v487, %v503
    %s506 = sadd.s32 %s169, 3
    %v507 = vstv %s506
    %vm508 = vcmp.lt.s32.totalorder %v507, %v168
    %v509 = vsel %vm508, 1, 0
    %510 = vset.pattern.permute.xlu0 0
    %511 = vperm.xlu0 %510, %v509
    %v512 = vpop.permute.xlu0 %511
    %vm513 = vcmp.eq.s32.totalorder %v512, 1
    %v514 = vsel %vm513, %v505, %v432
    %v515 = vsel %vm513, %v499, %v433
    %v516 = vpack.c.bf16 %v514, %v514
    %518 = vrot.lane.b32.xlu0 %v516, 32
    %v519 = vpop.permute.xlu0 %518
    %v521 = vsel %vm86, %v519, 0
    %523 = vmatprep.subr.bf16.mxu0 0
    %524 = vmatpush1.bf16.msra.mxu0 %v181
    %525 = vmatprep.subr.bf16.mxu0 0
    %526 = vmatpush1.bf16.msra.mxu0 %v182
    %527 = vmatprep.subr.bf16.mxu0 0
    %528 = vmatpush1.bf16.msra.mxu0 0
    %529 = vmatprep.subr.bf16.mxu0 0
    %530 = vmatpush1.bf16.msra.mxu0 0
    %531 = vmatprep.subr.bf16.mxu0 0
    %532 = vmatpush1.bf16.msra.mxu0 0
    %533 = vmatprep.subr.bf16.mxu0 0
    %534 = vmatpush1.bf16.msra.mxu0 0
    %535 = vmatprep.subr.bf16.mxu0 0
    %536 = vmatpush1.bf16.msra.mxu0 0
    %537 = vmatprep.subr.bf16.mxu0 0
    %538 = vmatpush1.bf16.msra.mxu0 0
    %539 = vmatprep.subr.bf16.mxu0 0
    %540 = vmatpush1.bf16.msra.mxu0 0
    %541 = vmatprep.subr.bf16.mxu0 0
    %542 = vmatpush1.bf16.msra.mxu0 0
    %543 = vmatprep.subr.bf16.mxu0 0
    %544 = vmatpush1.bf16.msra.mxu0 0
    %545 = vmatprep.subr.bf16.mxu0 0
    %546 = vmatpush1.bf16.msra.mxu0 0
    %547 = vmatprep.subr.bf16.mxu0 0
    %548 = vmatpush1.bf16.msra.mxu0 0
    %549 = vmatprep.subr.bf16.mxu0 0
    %550 = vmatpush1.bf16.msra.mxu0 0
    %551 = vmatprep.subr.bf16.mxu0 0
    %552 = vmatpush1.bf16.msra.mxu0 0
    %553 = vmatprep.subr.bf16.mxu0 0
    %554 = vmatpush1.bf16.msra.mxu0 0
    %555 = vmatprep.mubr.bf16.mxu0 0
    %556 = vmatmul.mubr.bf16.gmra.mrb[0].mxu0 %v521
    %v557 = vpop.f32.mrb[0].mxu0
    %v558 = vadd.f32 0.0, %v557
    %v559 = vpop.f32.mrb[0].mxu0
    %v560 = vpop.f32.mrb[0].mxu0
    %v561 = vpop.f32.mrb[0].mxu0
    %562 = vdwg.mxu0
    %v563 = vadd.f32 %v150, %v558
    %v564 = vxor.u32 %v563, 2147483648
    %v565 = vmul.f32 %v564, 1.442695
    %v566 = vpow.pop %v565
    %v567 = vadd.f32 %v566, 1.0
    %v568 = vrcp.pop %v567
    %v569 = vmul.f32 1.0, %v568
    %v570 = vtanh.pop %v563
    %v571 = vmul.f32 %v569, %v515
    %573 = vrot.lane.b32.xlu0 %v570, 64
    %v574 = vpop.permute.xlu0 %573
    %v576 = vmul.f32 %v569, %v574
    %578 = vrot.lane.b32.xlu0 %v576, 32
    %v579 = vpop.permute.xlu0 %578
    %v581 = vadd.f32 %v571, %v579
    %v582 = vtanh.pop %v581
    %584 = vrot.lane.b32.xlu0 %v582, 64
    %v585 = vpop.permute.xlu0 %584
    %v587 = vmul.f32 %v569, %v585
    %s588 = sadd.s32 %s169, 4
    %v589 = vstv %s588
    %vm590 = vcmp.lt.s32.totalorder %v589, %v168
    %v591 = vsel %vm590, 1, 0
    %592 = vset.pattern.permute.xlu0 0
    %593 = vperm.xlu0 %592, %v591
    %v594 = vpop.permute.xlu0 %593
    %vm595 = vcmp.eq.s32.totalorder %v594, 1
    %v596 = vsel %vm595, %v587, %v514
    %v597 = vsel %vm595, %v581, %v515
    %v598 = vpack.c.bf16 %v596, %v596
    %600 = vrot.lane.b32.xlu0 %v598, 32
    %v601 = vpop.permute.xlu0 %600
    %v603 = vsel %vm86, %v601, 0
    %605 = vmatprep.subr.bf16.mxu0 0
    %606 = vmatpush1.bf16.msra.mxu0 %v181
    %607 = vmatprep.subr.bf16.mxu0 0
    %608 = vmatpush1.bf16.msra.mxu0 %v182
    %609 = vmatprep.subr.bf16.mxu0 0
    %610 = vmatpush1.bf16.msra.mxu0 0
    %611 = vmatprep.subr.bf16.mxu0 0
    %612 = vmatpush1.bf16.msra.mxu0 0
    %613 = vmatprep.subr.bf16.mxu0 0
    %614 = vmatpush1.bf16.msra.mxu0 0
    %615 = vmatprep.subr.bf16.mxu0 0
    %616 = vmatpush1.bf16.msra.mxu0 0
    %617 = vmatprep.subr.bf16.mxu0 0
    %618 = vmatpush1.bf16.msra.mxu0 0
    %619 = vmatprep.subr.bf16.mxu0 0
    %620 = vmatpush1.bf16.msra.mxu0 0
    %621 = vmatprep.subr.bf16.mxu0 0
    %622 = vmatpush1.bf16.msra.mxu0 0
    %623 = vmatprep.subr.bf16.mxu0 0
    %624 = vmatpush1.bf16.msra.mxu0 0
    %625 = vmatprep.subr.bf16.mxu0 0
    %626 = vmatpush1.bf16.msra.mxu0 0
    %627 = vmatprep.subr.bf16.mxu0 0
    %628 = vmatpush1.bf16.msra.mxu0 0
    %629 = vmatprep.subr.bf16.mxu0 0
    %630 = vmatpush1.bf16.msra.mxu0 0
    %631 = vmatprep.subr.bf16.mxu0 0
    %632 = vmatpush1.bf16.msra.mxu0 0
    %633 = vmatprep.subr.bf16.mxu0 0
    %634 = vmatpush1.bf16.msra.mxu0 0
    %635 = vmatprep.subr.bf16.mxu0 0
    %636 = vmatpush1.bf16.msra.mxu0 0
    %637 = vmatprep.mubr.bf16.mxu0 0
    %638 = vmatmul.mubr.bf16.gmra.mrb[0].mxu0 %v603
    %v639 = vpop.f32.mrb[0].mxu0
    %v640 = vadd.f32 0.0, %v639
    %v641 = vpop.f32.mrb[0].mxu0
    %v642 = vpop.f32.mrb[0].mxu0
    %v643 = vpop.f32.mrb[0].mxu0
    %644 = vdwg.mxu0
    %v645 = vadd.f32 %v153, %v640
    %v646 = vxor.u32 %v645, 2147483648
    %v647 = vmul.f32 %v646, 1.442695
    %v648 = vpow.pop %v647
    %v649 = vadd.f32 %v648, 1.0
    %v650 = vrcp.pop %v649
    %v651 = vmul.f32 1.0, %v650
    %v652 = vtanh.pop %v645
    %v653 = vmul.f32 %v651, %v597
    %655 = vrot.lane.b32.xlu0 %v652, 64
    %v656 = vpop.permute.xlu0 %655
    %v658 = vmul.f32 %v651, %v656
    %660 = vrot.lane.b32.xlu0 %v658, 32
    %v661 = vpop.permute.xlu0 %660
    %v663 = vadd.f32 %v653, %v661
    %v664 = vtanh.pop %v663
    %666 = vrot.lane.b32.xlu0 %v664, 64
    %v667 = vpop.permute.xlu0 %666
    %v669 = vmul.f32 %v651, %v667
    %s670 = sadd.s32 %s169, 5
    %v671 = vstv %s670
    %vm672 = vcmp.lt.s32.totalorder %v671, %v168
    %v673 = vsel %vm672, 1, 0
    %674 = vset.pattern.permute.xlu0 0
    %675 = vperm.xlu0 %674, %v673
    %v676 = vpop.permute.xlu0 %675
    %vm677 = vcmp.eq.s32.totalorder %v676, 1
    %v678 = vsel %vm677, %v669, %v596
    %v679 = vsel %vm677, %v663, %v597
    %v680 = vpack.c.bf16 %v678, %v678
    %682 = vrot.lane.b32.xlu0 %v680, 32
    %v683 = vpop.permute.xlu0 %682
    %v685 = vsel %vm86, %v683, 0
    %687 = vmatprep.subr.bf16.mxu0 0
    %688 = vmatpush1.bf16.msra.mxu0 %v181
    %689 = vmatprep.subr.bf16.mxu0 0
    %690 = vmatpush1.bf16.msra.mxu0 %v182
    %691 = vmatprep.subr.bf16.mxu0 0
    %692 = vmatpush1.bf16.msra.mxu0 0
    %693 = vmatprep.subr.bf16.mxu0 0
    %694 = vmatpush1.bf16.msra.mxu0 0
    %695 = vmatprep.subr.bf16.mxu0 0
    %696 = vmatpush1.bf16.msra.mxu0 0
    %697 = vmatprep.subr.bf16.mxu0 0
    %698 = vmatpush1.bf16.msra.mxu0 0
    %699 = vmatprep.subr.bf16.mxu0 0
    %700 = vmatpush1.bf16.msra.mxu0 0
    %701 = vmatprep.subr.bf16.mxu0 0
    %702 = vmatpush1.bf16.msra.mxu0 0
    %703 = vmatprep.subr.bf16.mxu0 0
    %704 = vmatpush1.bf16.msra.mxu0 0
    %705 = vmatprep.subr.bf16.mxu0 0
    %706 = vmatpush1.bf16.msra.mxu0 0
    %707 = vmatprep.subr.bf16.mxu0 0
    %708 = vmatpush1.bf16.msra.mxu0 0
    %709 = vmatprep.subr.bf16.mxu0 0
    %710 = vmatpush1.bf16.msra.mxu0 0
    %711 = vmatprep.subr.bf16.mxu0 0
    %712 = vmatpush1.bf16.msra.mxu0 0
    %713 = vmatprep.subr.bf16.mxu0 0
    %714 = vmatpush1.bf16.msra.mxu0 0
    %715 = vmatprep.subr.bf16.mxu0 0
    %716 = vmatpush1.bf16.msra.mxu0 0
    %717 = vmatprep.subr.bf16.mxu0 0
    %718 = vmatpush1.bf16.msra.mxu0 0
    %719 = vmatprep.mubr.bf16.mxu0 0
    %720 = vmatmul.mubr.bf16.gmra.mrb[0].mxu0 %v685
    %v721 = vpop.f32.mrb[0].mxu0
    %v722 = vadd.f32 0.0, %v721
    %v723 = vpop.f32.mrb[0].mxu0
    %v724 = vpop.f32.mrb[0].mxu0
    %v725 = vpop.f32.mrb[0].mxu0
    %726 = vdwg.mxu0
    %v727 = vadd.f32 %v158, %v722
    %v728 = vxor.u32 %v727, 2147483648
    %v729 = vmul.f32 %v728, 1.442695
    %v730 = vpow.pop %v729
    %v731 = vadd.f32 %v730, 1.0
    %v732 = vrcp.pop %v731
    %v733 = vmul.f32 1.0, %v732
    %v734 = vtanh.pop %v727
    %v735 = vmul.f32 %v733, %v679
    %737 = vrot.lane.b32.xlu0 %v734, 64
    %v738 = vpop.permute.xlu0 %737
    %v740 = vmul.f32 %v733, %v738
    %742 = vrot.lane.b32.xlu0 %v740, 32
    %v743 = vpop.permute.xlu0 %742
    %v745 = vadd.f32 %v735, %v743
    %v746 = vtanh.pop %v745
    %748 = vrot.lane.b32.xlu0 %v746, 64
    %v749 = vpop.permute.xlu0 %748
    %v751 = vmul.f32 %v733, %v749
    %s752 = sadd.s32 %s169, 6
    %v753 = vstv %s752
    %vm754 = vcmp.lt.s32.totalorder %v753, %v168
    %v755 = vsel %vm754, 1, 0
    %756 = vset.pattern.permute.xlu0 0
    %757 = vperm.xlu0 %756, %v755
    %v758 = vpop.permute.xlu0 %757
    %vm759 = vcmp.eq.s32.totalorder %v758, 1
    %v760 = vsel %vm759, %v751, %v678
    %v761 = vsel %vm759, %v745, %v679
    %v762 = vpack.c.bf16 %v760, %v760
    %764 = vrot.lane.b32.xlu0 %v762, 32
    %v765 = vpop.permute.xlu0 %764
    %v767 = vsel %vm86, %v765, 0
    %769 = vmatprep.subr.bf16.mxu0 0
    %770 = vmatpush1.bf16.msra.mxu0 %v181
    %771 = vmatprep.subr.bf16.mxu0 0
    %772 = vmatpush1.bf16.msra.mxu0 %v182
    %773 = vmatprep.subr.bf16.mxu0 0
    %774 = vmatpush1.bf16.msra.mxu0 0
    %775 = vmatprep.subr.bf16.mxu0 0
    %776 = vmatpush1.bf16.msra.mxu0 0
    %777 = vmatprep.subr.bf16.mxu0 0
    %778 = vmatpush1.bf16.msra.mxu0 0
    %779 = vmatprep.subr.bf16.mxu0 0
    %780 = vmatpush1.bf16.msra.mxu0 0
    %781 = vmatprep.subr.bf16.mxu0 0
    %782 = vmatpush1.bf16.msra.mxu0 0
    %783 = vmatprep.subr.bf16.mxu0 0
    %784 = vmatpush1.bf16.msra.mxu0 0
    %785 = vmatprep.subr.bf16.mxu0 0
    %786 = vmatpush1.bf16.msra.mxu0 0
    %787 = vmatprep.subr.bf16.mxu0 0
    %788 = vmatpush1.bf16.msra.mxu0 0
    %789 = vmatprep.subr.bf16.mxu0 0
    %790 = vmatpush1.bf16.msra.mxu0 0
    %791 = vmatprep.subr.bf16.mxu0 0
    %792 = vmatpush1.bf16.msra.mxu0 0
    %793 = vmatprep.subr.bf16.mxu0 0
    %794 = vmatpush1.bf16.msra.mxu0 0
    %795 = vmatprep.subr.bf16.mxu0 0
    %796 = vmatpush1.bf16.msra.mxu0 0
    %797 = vmatprep.subr.bf16.mxu0 0
    %798 = vmatpush1.bf16.msra.mxu0 0
    %799 = vmatprep.subr.bf16.mxu0 0
    %800 = vmatpush1.bf16.msra.mxu0 0
    %801 = vmatprep.mubr.bf16.mxu0 0
    %802 = vmatmul.mubr.bf16.gmra.mrb[0].mxu0 %v767
    %v803 = vpop.f32.mrb[0].mxu0
    %v804 = vadd.f32 0.0, %v803
    %v805 = vpop.f32.mrb[0].mxu0
    %v806 = vpop.f32.mrb[0].mxu0
    %v807 = vpop.f32.mrb[0].mxu0
    %808 = vdwg.mxu0
    %v809 = vadd.f32 %v161, %v804
    %v810 = vxor.u32 %v809, 2147483648
    %v811 = vmul.f32 %v810, 1.442695
    %v812 = vpow.pop %v811
    %v813 = vadd.f32 %v812, 1.0
    %v814 = vrcp.pop %v813
    %v815 = vmul.f32 1.0, %v814
    %v816 = vtanh.pop %v809
    %v817 = vmul.f32 %v815, %v761
    %819 = vrot.lane.b32.xlu0 %v816, 64
    %v820 = vpop.permute.xlu0 %819
    %v822 = vmul.f32 %v815, %v820
    %824 = vrot.lane.b32.xlu0 %v822, 32
    %v825 = vpop.permute.xlu0 %824
    %v827 = vadd.f32 %v817, %v825
    %v828 = vtanh.pop %v827
    %830 = vrot.lane.b32.xlu0 %v828, 64
    %v831 = vpop.permute.xlu0 %830
    %v833 = vmul.f32 %v815, %v831
    %s834 = sadd.s32 %s169, 7
    %v835 = vstv %s834
    %vm836 = vcmp.lt.s32.totalorder %v835, %v168
    %v837 = vsel %vm836, 1, 0
    %838 = vset.pattern.permute.xlu0 0
    %839 = vperm.xlu0 %838, %v837
    %v840 = vpop.permute.xlu0 %839
    %vm841 = vcmp.eq.s32.totalorder %v840, 1
    %v842 = vsel %vm841, %v833, %v760
    %v843 = vsel %vm841, %v827, %v761
    %845 = vrot.lane.b32.xlu0 %v842, 32
    %v846 = vpop.permute.xlu0 %845
    %848 = vst.msk [vmem:[#allocation2] sm:$0xff] %vm86, %v846
    %850 = vrot.lane.b32.xlu0 %v843, 96
    %v851 = vpop.permute.xlu0 %850
    %853 = vst.msk [vmem:[#allocation3] sm:$0xff] %vm86, %v851
    // Predicated region
    $region34: #{tpu_custom_call.1} parent=1 // pred_check
      %p854 = pneg %p28
    $region35: #{tpu_custom_call.1} parent=1 // pred_check_branch
      %856 = sbr.rel (%p854) target = $region37
    $region36: #{tpu_custom_call.1} parent=1 // pred_region
      %v857 = vpack.c.bf16 %v842, %v842
      %v858 = vld [vmem:[%s5] sm:$0xf]
      %v859 = vld [vmem:[%s5 + $0x4] sm:$0xf]
      %v860 = vld [vmem:[%s5 + $0x8] sm:$0xf]
      %v861 = vld [vmem:[%s5 + $0xc] sm:$0xf]
      %v862 = vld [vmem:[%s6] sm:$0x1]
      %v864 = vlaneseq
      %v865 = vshrl.u32 %v864, 7
      %v866 = vsub.s32 0, %v865
      %v867 = vrot.slane %v862, %v866
      %870 = vrot.lane.b32.xlu0 %v857, 32
      %v871 = vpop.permute.xlu0 %870
      %v876 = vunpack.c.l.b16 %v858
      %v877 = vunpack.c.l.b16 %v859
      %v878 = vunpack.c.l.b16 %v860
      %v879 = vunpack.c.l.b16 %v861
      %v880 = vpack.c.b16 %v877, %v876
      %v881 = vpack.c.b16 %v879, %v878
      %v885 = vsel %vm86, %v871, 0
      %887 = vmatprep.subr.bf16.mxu0 0
      %888 = vmatpush1.bf16.msra.mxu0 %v880
      %889 = vmatprep.subr.bf16.mxu0 0
      %890 = vmatpush1.bf16.msra.mxu0 %v881
      %891 = vmatprep.subr.bf16.mxu0 0
      %892 = vmatpush1.bf16.msra.mxu0 0
      %893 = vmatprep.subr.bf16.mxu0 0
      %894 = vmatpush1.bf16.msra.mxu0 0
      %895 = vmatprep.subr.bf16.mxu0 0
      %896 = vmatpush1.bf16.msra.mxu0 0
      %897 = vmatprep.subr.bf16.mxu0 0
      %898 = vmatpush1.bf16.msra.mxu0 0
      %899 = vmatprep.subr.bf16.mxu0 0
      %900 = vmatpush1.bf16.msra.mxu0 0
      %901 = vmatprep.subr.bf16.mxu0 0
      %902 = vmatpush1.bf16.msra.mxu0 0
      %903 = vmatprep.subr.bf16.mxu0 0
      %904 = vmatpush1.bf16.msra.mxu0 0
      %905 = vmatprep.subr.bf16.mxu0 0
      %906 = vmatpush1.bf16.msra.mxu0 0
      %907 = vmatprep.subr.bf16.mxu0 0
      %908 = vmatpush1.bf16.msra.mxu0 0
      %909 = vmatprep.subr.bf16.mxu0 0
      %910 = vmatpush1.bf16.msra.mxu0 0
      %911 = vmatprep.subr.bf16.mxu0 0
      %912 = vmatpush1.bf16.msra.mxu0 0
      %913 = vmatprep.subr.bf16.mxu0 0
      %914 = vmatpush1.bf16.msra.mxu0 0
      %915 = vmatprep.subr.bf16.mxu0 0
      %916 = vmatpush1.bf16.msra.mxu0 0
      %917 = vmatprep.subr.bf16.mxu0 0
      %918 = vmatpush1.bf16.msra.mxu0 0
      %919 = vmatprep.mubr.bf16.mxu0 0
      %920 = vmatmul.mubr.bf16.gmra.mrb[0].mxu0 %v885
      %v921 = vpop.f32.mrb[0].mxu0
      %v922 = vadd.f32 %v867, %v921
      %v923 = vpop.f32.mrb[0].mxu0
      %v924 = vpop.f32.mrb[0].mxu0
      %v925 = vpop.f32.mrb[0].mxu0
      %926 = vdwg.mxu0
      %927 = vst [vmem:[#allocation4] sm:$0xff] %v922
    $region37: #{tpu_custom_call.1} parent=1 // pred_fallthru
      _
    // Predicated region
    $region38: #{tpu_custom_call.1} parent=1 // pred_check
      _
    $region39: #{tpu_custom_call.1} parent=1 // pred_check_branch
      %929 = sbr.rel (0) target = $region41
    $region40: #{tpu_custom_call.1} parent=1 // pred_region
      %s931 = ssub.s32 128, 128
      %932 = vsyncadd [#allocation5], %s931
      %s934 = sshll.u32 [#allocation4], 4
      %s935 = int_to_ptr.vmem [resolvable:$true] %s934
      %937 = dma.vmem_to_hbm [thread:$0]  %s935, 128, %s7, [#allocation5]
    $region41: #{tpu_custom_call.1} parent=1 // pred_fallthru
      _
    // Predicated region
    $region42: #{tpu_custom_call.1} parent=1 // pred_check
      _
    $region43: #{tpu_custom_call.1} parent=1 // pred_check_branch
      %939 = sbr.rel (0) target = $region45
    $region44: #{tpu_custom_call.1} parent=1 // pred_region
      %940 = dma.done [#allocation5], 128
    $region45: #{tpu_custom_call.1} parent=1 // pred_fallthru
      _
    %941 = vsyncpa [#allocation5], 1

</llo_original>
